<compile_context>
chip_gen: v6e
topology: v6e:2x2x1
jax: 0.10.0
libtpu: 0.0.40
codegen_flags: <defaults>
</compile_context>

<pallas_src>
import math

import jax
import jax.numpy as jnp
from jax.experimental import pallas as pl
from jax.experimental.pallas import tpu as pltpu


def _build_pe_table(feature_dim=(128, 128)) -> jnp.ndarray:
    """Full (feature_dim[0], feature_dim[1]) sinusoidal PE table, exactly like
    the PyTorch __init__ (fp32). The leading (1,1) dims of the PyTorch buffer
    are pure broadcasting and are dropped here."""
    n_pos, n_dim = feature_dim
    position = jnp.arange(n_pos, dtype=jnp.float32)[:, None]              # [n_pos, 1]
    div_term = jnp.exp(
        jnp.arange(0, n_dim, 2, dtype=jnp.float32) * (-math.log(10000.0) / n_dim)
    )                                                                     # [n_dim//2]
    angles = position * div_term                                          # [n_pos, n_dim//2]
    # interleave: even lanes = sin, odd lanes = cos
    pe = jnp.stack([jnp.sin(angles), jnp.cos(angles)], axis=-1).reshape(n_pos, n_dim)
    return pe.astype(jnp.float32)


def _pe_add_kernel(x_ref, pe_ref, o_ref):
    # x_ref/o_ref: [block_rows, block_cols]; pe_ref: [1, block_cols] broadcast
    # over rows.  Add in fp32 to match PyTorch promotion (x + fp32 PE buffer).
    o_ref[...] = (x_ref[...].astype(jnp.float32) + pe_ref[...]).astype(o_ref.dtype)


def _chip_block_target():
    """Per-generation target bytes per (input or output) block buffer."""
    kind = ""
    try:
        kind = jax.devices()[0].device_kind.lower()
    except Exception:
        pass
    is_v7 = "v7" in kind
    if "v5" in kind:            # v5e: 16 MiB default scoped VMEM -> stay at 2 MiB
        return 2 << 20, is_v7
    if "v6" in kind or is_v7:   # v6e/v7x: bigger blocks amortize per-step overhead
        return 4 << 20, is_v7
    return 2 << 20, is_v7       # unknown chip: conservative


def positional_encoding_add(x: jnp.ndarray, pe_full: jnp.ndarray, *,
                            out_dtype=None, block_rows=None, block_cols=None):
    """PositionalEncoding forward, mode='add', eval-mode dropout (identity).

    x: [B, C, H, W]; pe_full: fp32 [feature_dim[0], feature_dim[1]] table.
    Returns x + pe[:H, :W] broadcast over (B, C).
    out_dtype=None -> promote(x.dtype, float32) like PyTorch (f64 is downcast
    to f32 — TPUs have no f64).  Pass jnp.bfloat16 for a lower-traffic output.
    """
    B, C, H, W = x.shape
    assert H <= pe_full.shape[0] and W <= pe_full.shape[1], (
        f"input spatial dims ({H},{W}) exceed PE table shape {tuple(pe_full.shape)}")

    if x.dtype == jnp.float64:            # TPU has no f64; documented downcast
        x = x.astype(jnp.float32)
    if out_dtype is None:
        out_dtype = jnp.promote_types(x.dtype, jnp.float32)
        if out_dtype == jnp.float64:
            out_dtype = jnp.float32
    out_dtype = jnp.dtype(out_dtype)

    rows, cols = B * C, H * W
    # Lane-dense flattening: NCHW is contiguous, so these reshapes are free.
    x2 = x.reshape(rows, cols)
    pe_row = pe_full[:H, :W].reshape(1, cols).astype(jnp.float32)

    in_item = jnp.dtype(x.dtype).itemsize
    out_item = out_dtype.itemsize
    itemsize = max(in_item, out_item)
    target, is_v7 = _chip_block_target()

    # ---- column tiling: guard the 8-row sublane floor against very wide H*W.
    if block_cols is None:
        if 8 * cols * itemsize > target and cols > 128:
            block_cols = min(cols, max(128, (target // (8 * itemsize)) // 128 * 128))
        else:
            block_cols = cols
    else:
        block_cols = min(int(block_cols), cols)
    if block_cols < cols:
        block_cols = min(cols, max(128, (block_cols // 128) * 128))  # lane-aligned

    # ---- row tiling: fill the per-buffer budget, sublane (8) aligned.
    auto_rows = block_rows is None
    if auto_rows:
        block_rows = max(8, (target // (block_cols * itemsize)) // 8 * 8)
    block_rows = min(int(block_rows), rows)
    if block_rows < rows:
        block_rows = max(8, (block_rows // 8) * 8)

    row_blocks = pl.cdiv(rows, block_rows)
    col_blocks = pl.cdiv(cols, block_cols)

    # v7x has 2 TensorCores: make sure the "parallel" grid has >= 2 steps so
    # both cores get work (only when the row block size was auto-derived).
    if is_v7 and auto_rows and row_blocks * col_blocks == 1 and rows >= 16:
        block_rows = max(8, (((rows + 1) // 2 + 7) // 8) * 8)
        row_blocks = pl.cdiv(rows, block_rows)

    grid = (row_blocks, col_blocks)

    # Scoped-VMEM budget: 2x(in)+2x(out) double buffers + PE row + headroom;
    # never below the common 32 MiB default, capped under v7x's 64 MiB physical.
    need = (2 * block_rows * block_cols * (in_item + out_item)
            + 2 * block_cols * 4 + (8 << 20))
    vmem_limit = int(min(max(need, 32 << 20), 48 << 20))

    cost = pl.CostEstimate(
        flops=rows * cols,
        transcendentals=0,
        bytes_accessed=rows * cols * (in_item + out_item) + cols * 4 * col_blocks,
    )

    def make_call(pe_single_buffer):
        pe_kwargs = {}
        if pe_single_buffer:
            # Constant index_map -> the PE row is fetched once; one buffer is
            # enough, freeing block_cols*4 bytes of VMEM.
            pe_kwargs["pipeline_mode"] = pl.Buffered(1)
        return pl.pallas_call(
            _pe_add_kernel,
            out_shape=jax.ShapeDtypeStruct((rows, cols), out_dtype),
            grid=grid,
            in_specs=[
                pl.BlockSpec((block_rows, block_cols), lambda r, c: (r, c)),
                pl.BlockSpec((1, block_cols), lambda r, c: (0, c), **pe_kwargs),
            ],
            out_specs=pl.BlockSpec((block_rows, block_cols), lambda r, c: (r, c)),
            compiler_params=pltpu.CompilerParams(
                dimension_semantics=("parallel", "parallel"),
                vmem_limit_bytes=vmem_limit),
            cost_estimate=cost,
        )

    try:
        out2 = make_call(pe_single_buffer=(col_blocks == 1))(x2, pe_row)
    except Exception:
        # Fall back to default double-buffering if Buffered(1) is unsupported.
        out2 = make_call(pe_single_buffer=False)(x2, pe_row)

    return out2.reshape(B, C, H, W)


if __name__ == "__main__":
    # Module config (default): feature_dim=(128, 128), mode='add', dropout eval.
    feature_dim = (128, 128)
    pe_full = _build_pe_table(feature_dim)
    key = jax.random.PRNGKey(0)

    # Case 1: fp32, [batch, channel, seq, dim] like the PyTorch docstring.
    B, C, H, W = 2, 4, 8, 128
    x = jax.random.normal(key, (B, C, H, W), dtype=jnp.float32)
    out = jax.block_until_ready(positional_encoding_add(x, pe_full))
    ref = x + pe_full[None, None, :H, :W]
    assert out.shape == (B, C, H, W) and out.dtype == jnp.float32
    assert jnp.allclose(out, ref, atol=1e-6), "fp32 mismatch vs reference"

    # Case 2: bf16 input, explicit row blocking -> multi-row-block grid, f32 out.
    B2, C2, H2, W2 = 4, 8, 16, 128
    x_bf16 = jax.random.normal(jax.random.PRNGKey(1), (B2, C2, H2, W2),
                               dtype=jnp.bfloat16)
    out2 = jax.block_until_ready(
        positional_encoding_add(x_bf16, pe_full, block_rows=16))
    ref2 = x_bf16.astype(jnp.float32) + pe_full[None, None, :H2, :W2]
    assert out2.shape == (B2, C2, H2, W2) and out2.dtype == jnp.float32
    assert jnp.allclose(out2, ref2, atol=1e-5), "bf16->f32 mismatch vs reference"

    # Case 3: explicit column blocking -> exercises the 2-D (row, col) grid path.
    out3 = jax.block_until_ready(
        positional_encoding_add(x, pe_full, block_cols=512))
    assert jnp.allclose(out3, ref, atol=1e-6), "column-tiled mismatch vs reference"

    # Case 4: bf16 fast-path output (lower HBM write traffic).
    out4 = jax.block_until_ready(
        positional_encoding_add(x_bf16, pe_full, out_dtype=jnp.bfloat16))
    ref4 = (x_bf16.astype(jnp.float32)
            + pe_full[None, None, :H2, :W2]).astype(jnp.bfloat16)
    assert out4.dtype == jnp.bfloat16
    assert jnp.allclose(out4.astype(jnp.float32), ref4.astype(jnp.float32),
                        atol=2e-2), "bf16-out mismatch vs reference"

    print("KERNEL_OK")
</pallas_src>

<mosaic_0001>
module attributes {stable_mosaic.version = 11 : i64} {
  func.func @_pe_add_kernel(%arg0: i32, %arg1: i32, %arg2: memref<8x1024xf32, #tpu.memory_space<vmem>>, %arg3: memref<1x1024xf32, #tpu.memory_space<vmem>>, %arg4: memref<8x1024xf32, #tpu.memory_space<vmem>>) attributes {dimension_semantics = [#tpu.dimension_semantics<parallel>, #tpu.dimension_semantics<parallel>], iteration_bounds = array<i64: 1, 1>, scalar_prefetch = 0 : i64, scratch_operands = 0 : i64, tpu.core_type = #tpu.core_type<tc>, window_params = [{transform_indices = @transform_0, window_bounds = array<i64: 8, 1024>}, {pipeline_mode = #tpu.pipeline_mode<synchronous>, transform_indices = @transform_1, window_bounds = array<i64: 1, 1024>}, {transform_indices = @transform_2, window_bounds = array<i64: 8, 1024>}]} {
    %c0 = arith.constant 0 : index
    %c0_0 = arith.constant 0 : index
    %0 = vector.load %arg2[%c0, %c0_0] : memref<8x1024xf32, #tpu.memory_space<vmem>>, vector<8x1024xf32>
    %c0_1 = arith.constant 0 : index
    %c0_2 = arith.constant 0 : index
    %1 = vector.load %arg3[%c0_1, %c0_2] : memref<1x1024xf32, #tpu.memory_space<vmem>>, vector<1x1024xf32>
    %2 = vector.broadcast %1 : vector<1x1024xf32> to vector<8x1024xf32>
    %3 = arith.addf %0, %2 : vector<8x1024xf32>
    %c0_3 = arith.constant 0 : index
    %c0_4 = arith.constant 0 : index
    %4 = vector.load %arg4[%c0_3, %c0_4] : memref<8x1024xf32, #tpu.memory_space<vmem>>, vector<8x1024xf32>
    tpu.vector_store %arg4[%c0_3, %c0_4], %3 {strides = array<i32>} : memref<8x1024xf32, #tpu.memory_space<vmem>>, vector<8x1024xf32>,
    return
  }
  func.func @transform_0(%arg0: i32, %arg1: i32) -> (i32, i32) {
    %c0_i32 = arith.constant 0 : i32
    return %arg0, %arg1 : i32, i32
  }
  func.func @transform_1(%arg0: i32, %arg1: i32) -> (i32, i32) {
    %c0_i32 = arith.constant 0 : i32
    %c0_i32_0 = arith.constant 0 : i32
    return %c0_i32, %arg1 : i32, i32
  }
  func.func @transform_2(%arg0: i32, %arg1: i32) -> (i32, i32) {
    %c0_i32 = arith.constant 0 : i32
    return %arg0, %arg1 : i32, i32
  }
}

module attributes {stable_mosaic.version = 11 : i64} {
  func.func @_pe_add_kernel(%arg0: i32, %arg1: i32, %arg2: memref<8x1024xf32, #tpu.memory_space<vmem>>, %arg3: memref<1x1024xf32, #tpu.memory_space<vmem>>, %arg4: memref<8x1024xf32, #tpu.memory_space<vmem>>) attributes {dimension_semantics = [#tpu.dimension_semantics<parallel>, #tpu.dimension_semantics<parallel>], iteration_bounds = array<i64: 1, 1>, scalar_prefetch = 0 : i64, scratch_operands = 0 : i64, tpu.core_type = #tpu.core_type<tc>, window_params = [{transform_indices = @transform_0, window_bounds = array<i64: 8, 1024>}, {transform_indices = @transform_1, window_bounds = array<i64: 1, 1024>}, {transform_indices = @transform_2, window_bounds = array<i64: 8, 1024>}]} {
    %c0 = arith.constant 0 : index
    %c0_0 = arith.constant 0 : index
    %0 = vector.load %arg2[%c0, %c0_0] : memref<8x1024xf32, #tpu.memory_space<vmem>>, vector<8x1024xf32>
    %c0_1 = arith.constant 0 : index
    %c0_2 = arith.constant 0 : index
    %1 = vector.load %arg3[%c0_1, %c0_2] : memref<1x1024xf32, #tpu.memory_space<vmem>>, vector<1x1024xf32>
    %2 = vector.broadcast %1 : vector<1x1024xf32> to vector<8x1024xf32>
    %3 = arith.addf %0, %2 : vector<8x1024xf32>
    %c0_3 = arith.constant 0 : index
    %c0_4 = arith.constant 0 : index
    %4 = vector.load %arg4[%c0_3, %c0_4] : memref<8x1024xf32, #tpu.memory_space<vmem>>, vector<8x1024xf32>
    tpu.vector_store %arg4[%c0_3, %c0_4], %3 {strides = array<i32>} : memref<8x1024xf32, #tpu.memory_space<vmem>>, vector<8x1024xf32>,
    return
  }
  func.func @transform_0(%arg0: i32, %arg1: i32) -> (i32, i32) {
    %c0_i32 = arith.constant 0 : i32
    return %arg0, %arg1 : i32, i32
  }
  func.func @transform_1(%arg0: i32, %arg1: i32) -> (i32, i32) {
    %c0_i32 = arith.constant 0 : i32
    %c0_i32_0 = arith.constant 0 : i32
    return %c0_i32, %arg1 : i32, i32
  }
  func.func @transform_2(%arg0: i32, %arg1: i32) -> (i32, i32) {
    %c0_i32 = arith.constant 0 : i32
    return %arg0, %arg1 : i32, i32
  }
}

</mosaic_0001>

<llo_original>
// kernel: tpu_custom_call.1
$region0: #{tpu_custom_call.1}
  #allocation0 [shape = 'u32[]', space=smem, size = 0x4, offset = 0x4, fixed_abs, tag = 'smem constant byte address 0x4 - core index']
  #allocation1 [shape = 'u32[144,128]{1,0:T(1,128)}', space=vmem, size = 0x12000, scoped, tag = 'internal scratch']
  %s0 = inlined_call_operand.hbm [shape: f32[8,1024], index: 0, kind: input, shape index: {}]
  %s1 = inlined_call_operand.hbm [shape: f32[1,1024], index: 1, kind: input, shape index: {}]
  %s2 = inlined_call_operand.hbm [shape: f32[8,1024], index: 2, kind: output, shape index: {}]
  %s3 = sld [smem:[#allocation0]]
  $region26: #{tpu_custom_call.1} parent=0
    _
  %s5 = ssub.s32 1, %s3
  %s6 = scalar_select 0, %s5, %s3
  $region1: #{tpu_custom_call.1} parent=0
    #allocation2 [shape = 'u8[32768]{0}', space=vmem, size = 0x8000, scoped, tag = 'input window, operand 0, single buffered']
    #allocation3 [shape = 's32[1]{0}', space=sflag, size = 0x4, scoped, tag = 'scoped memory for tpu_custom_call.1']
    #allocation4 [shape = 's32[1]{0}', space=sflag, size = 0x4, scoped, tag = 'scoped memory for tpu_custom_call.1']
    #allocation5 [shape = 'u8[4096]{0}', space=vmem, size = 0x1000, scoped, tag = 'input window, operand 1, single buffered']
    #allocation6 [shape = 's32[1]{0}', space=sflag, size = 0x4, scoped, tag = 'scoped memory for tpu_custom_call.1']
    #allocation7 [shape = 'u8[32768]{0}', space=vmem, size = 0x8000, scoped, tag = 'output window, operand 0, single buffered']
    %7 = vsyncpa [#allocation3], 0
    %8 = vsyncpa [#allocation6], 0
    %9 = vsyncpa [#allocation4], 0
    // Predicated region
    $region2: #{tpu_custom_call.1} parent=1 // pred_check
      _
    $region3: #{tpu_custom_call.1} parent=1 // pred_check_branch
      %11 = sbr.rel (0) target = $region5
    $region4: #{tpu_custom_call.1} parent=1 // pred_region
      %s13 = ssub.s32 1024, 1024
      %14 = vsyncadd [#allocation3], %s13
      %s16 = sshll.u32 [#allocation2], 4
      %s17 = int_to_ptr.vmem [resolvable:$true] %s16
      %19 = dma.hbm_to_vmem [thread:$0]  %s0, 1024, %s17, [#allocation3]
    $region5: #{tpu_custom_call.1} parent=1 // pred_fallthru
      _
    // Predicated region
    $region6: #{tpu_custom_call.1} parent=1 // pred_check
      _
    $region7: #{tpu_custom_call.1} parent=1 // pred_check_branch
      %21 = sbr.rel (0) target = $region9
    $region8: #{tpu_custom_call.1} parent=1 // pred_region
      %s23 = ssub.s32 128, 128
      %24 = vsyncadd [#allocation6], %s23
      %s26 = sshll.u32 [#allocation5], 4
      %s27 = int_to_ptr.vmem [resolvable:$true] %s26
      %29 = dma.hbm_to_vmem [thread:$0]  %s1, 128, %s27, [#allocation6]
    $region9: #{tpu_custom_call.1} parent=1 // pred_fallthru
      _
    // Predicated region
    $region10: #{tpu_custom_call.1} parent=1 // pred_check
      _
    $region11: #{tpu_custom_call.1} parent=1 // pred_check_branch
      %31 = sbr.rel (0) target = $region13
    $region12: #{tpu_custom_call.1} parent=1 // pred_region
      %32 = dma.done [#allocation3], 1024
    $region13: #{tpu_custom_call.1} parent=1 // pred_fallthru
      _
    // Predicated region
    $region14: #{tpu_custom_call.1} parent=1 // pred_check
      _
    $region15: #{tpu_custom_call.1} parent=1 // pred_check_branch
      %34 = sbr.rel (0) target = $region17
    $region16: #{tpu_custom_call.1} parent=1 // pred_region
      %35 = dma.done [#allocation6], 128
    $region17: #{tpu_custom_call.1} parent=1 // pred_fallthru
      _
    %v36 = vld [vmem:[#allocation2] sm:$0xff]
    %v37 = vld [vmem:[#allocation2 + $0x8] sm:$0xff]
    %v38 = vld [vmem:[#allocation2 + $0x10] sm:$0xff]
    %v39 = vld [vmem:[#allocation2 + $0x18] sm:$0xff]
    %v40 = vld [vmem:[#allocation2 + $0x20] sm:$0xff]
    %v41 = vld [vmem:[#allocation2 + $0x28] sm:$0xff]
    %v42 = vld [vmem:[#allocation2 + $0x30] sm:$0xff]
    %v43 = vld [vmem:[#allocation2 + $0x38] sm:$0xff]
    %v44 = vld [vmem:[#allocation5] sm:$0xff]
    %v46 = vlaneseq
    %v47 = vshrl.u32 %v46, 7
    %v48 = vsub.s32 0, %v47
    %v49 = vrot.slane %v44, %v48
    %v50 = vlaneseq
    %v51 = vshrl.u32 %v50, 7
    %v52 = vsub.s32 1, %v51
    %v53 = vrot.slane %v44, %v52
    %v54 = vlaneseq
    %v55 = vshrl.u32 %v54, 7
    %v56 = vsub.s32 2, %v55
    %v57 = vrot.slane %v44, %v56
    %v58 = vlaneseq
    %v59 = vshrl.u32 %v58, 7
    %v60 = vsub.s32 3, %v59
    %v61 = vrot.slane %v44, %v60
    %v62 = vlaneseq
    %v63 = vshrl.u32 %v62, 7
    %v64 = vsub.s32 4, %v63
    %v65 = vrot.slane %v44, %v64
    %v66 = vlaneseq
    %v67 = vshrl.u32 %v66, 7
    %v68 = vsub.s32 5, %v67
    %v69 = vrot.slane %v44, %v68
    %v70 = vlaneseq
    %v71 = vshrl.u32 %v70, 7
    %v72 = vsub.s32 6, %v71
    %v73 = vrot.slane %v44, %v72
    %v74 = vlaneseq
    %v75 = vshrl.u32 %v74, 7
    %v76 = vsub.s32 7, %v75
    %v77 = vrot.slane %v44, %v76
    %v86 = vadd.f32 %v36, %v49
    %v87 = vadd.f32 %v37, %v53
    %v88 = vadd.f32 %v38, %v57
    %v89 = vadd.f32 %v39, %v61
    %v90 = vadd.f32 %v40, %v65
    %v91 = vadd.f32 %v41, %v69
    %v92 = vadd.f32 %v42, %v73
    %v93 = vadd.f32 %v43, %v77
    %94 = vst [vmem:[#allocation7] sm:$0xff] %v86
    %95 = vst [vmem:[#allocation7 + $0x8] sm:$0xff] %v87
    %96 = vst [vmem:[#allocation7 + $0x10] sm:$0xff] %v88
    %97 = vst [vmem:[#allocation7 + $0x18] sm:$0xff] %v89
    %98 = vst [vmem:[#allocation7 + $0x20] sm:$0xff] %v90
    %99 = vst [vmem:[#allocation7 + $0x28] sm:$0xff] %v91
    %100 = vst [vmem:[#allocation7 + $0x30] sm:$0xff] %v92
    %101 = vst [vmem:[#allocation7 + $0x38] sm:$0xff] %v93
    // Predicated region
    $region18: #{tpu_custom_call.1} parent=1 // pred_check
      _
    $region19: #{tpu_custom_call.1} parent=1 // pred_check_branch
      %103 = sbr.rel (0) target = $region21
    $region20: #{tpu_custom_call.1} parent=1 // pred_region
      %s105 = ssub.s32 1024, 1024
      %106 = vsyncadd [#allocation4], %s105
      %s108 = sshll.u32 [#allocation7], 4
      %s109 = int_to_ptr.vmem [resolvable:$true] %s108
      %111 = dma.vmem_to_hbm [thread:$0]  %s109, 1024, %s2, [#allocation4]
    $region21: #{tpu_custom_call.1} parent=1 // pred_fallthru
      _
    // Predicated region
    $region22: #{tpu_custom_call.1} parent=1 // pred_check
      _
    $region23: #{tpu_custom_call.1} parent=1 // pred_check_branch
      %113 = sbr.rel (0) target = $region25
    $region24: #{tpu_custom_call.1} parent=1 // pred_region
      %114 = dma.done [#allocation4], 1024
    $region25: #{tpu_custom_call.1} parent=1 // pred_fallthru
      _
    %115 = vsyncpa [#allocation3], 1
    %116 = vsyncpa [#allocation6], 1
    %117 = vsyncpa [#allocation4], 1

// kernel: tpu_custom_call.1
$region0: #{tpu_custom_call.1}
  #allocation0 [shape = 'u32[]', space=smem, size = 0x4, offset = 0x4, fixed_abs, tag = 'smem constant byte address 0x4 - core index']
  #allocation1 [shape = 'u32[144,128]{1,0:T(1,128)}', space=vmem, size = 0x12000, scoped, tag = 'internal scratch']
  %s0 = inlined_call_operand.hbm [shape: f32[8,1024], index: 0, kind: input, shape index: {}]
  %s1 = inlined_call_operand.hbm [shape: f32[1,1024], index: 1, kind: input, shape index: {}]
  %s2 = inlined_call_operand.hbm [shape: f32[8,1024], index: 2, kind: output, shape index: {}]
  %s3 = sld [smem:[#allocation0]]
  $region26: #{tpu_custom_call.1} parent=0
    _
  %s5 = ssub.s32 1, %s3
  %s6 = scalar_select 0, %s5, %s3
  $region1: #{tpu_custom_call.1} parent=0
    #allocation2 [shape = 'u8[32768]{0}', space=vmem, size = 0x8000, scoped, tag = 'input window, operand 0, single buffered']
    #allocation3 [shape = 's32[1]{0}', space=sflag, size = 0x4, scoped, tag = 'scoped memory for tpu_custom_call.1']
    #allocation4 [shape = 's32[1]{0}', space=sflag, size = 0x4, scoped, tag = 'scoped memory for tpu_custom_call.1']
    #allocation5 [shape = 'u8[4096]{0}', space=vmem, size = 0x1000, scoped, tag = 'input window, operand 1, single buffered']
    #allocation6 [shape = 's32[1]{0}', space=sflag, size = 0x4, scoped, tag = 'scoped memory for tpu_custom_call.1']
    #allocation7 [shape = 'u8[32768]{0}', space=vmem, size = 0x8000, scoped, tag = 'output window, operand 0, single buffered']
    %7 = vsyncpa [#allocation3], 0
    %8 = vsyncpa [#allocation6], 0
    %9 = vsyncpa [#allocation4], 0
    // Predicated region
    $region2: #{tpu_custom_call.1} parent=1 // pred_check
      _
    $region3: #{tpu_custom_call.1} parent=1 // pred_check_branch
      %11 = sbr.rel (0) target = $region5
    $region4: #{tpu_custom_call.1} parent=1 // pred_region
      %s13 = ssub.s32 1024, 1024
      %14 = vsyncadd [#allocation3], %s13
      %s16 = sshll.u32 [#allocation2], 4
      %s17 = int_to_ptr.vmem [resolvable:$true] %s16
      %19 = dma.hbm_to_vmem [thread:$0]  %s0, 1024, %s17, [#allocation3]
    $region5: #{tpu_custom_call.1} parent=1 // pred_fallthru
      _
    // Predicated region
    $region6: #{tpu_custom_call.1} parent=1 // pred_check
      _
    $region7: #{tpu_custom_call.1} parent=1 // pred_check_branch
      %21 = sbr.rel (0) target = $region9
    $region8: #{tpu_custom_call.1} parent=1 // pred_region
      %s23 = ssub.s32 128, 128
      %24 = vsyncadd [#allocation6], %s23
      %s26 = sshll.u32 [#allocation5], 4
      %s27 = int_to_ptr.vmem [resolvable:$true] %s26
      %29 = dma.hbm_to_vmem [thread:$0]  %s1, 128, %s27, [#allocation6]
    $region9: #{tpu_custom_call.1} parent=1 // pred_fallthru
      _
    // Predicated region
    $region10: #{tpu_custom_call.1} parent=1 // pred_check
      _
    $region11: #{tpu_custom_call.1} parent=1 // pred_check_branch
      %31 = sbr.rel (0) target = $region13
    $region12: #{tpu_custom_call.1} parent=1 // pred_region
      %32 = dma.done [#allocation3], 1024
    $region13: #{tpu_custom_call.1} parent=1 // pred_fallthru
      _
    // Predicated region
    $region14: #{tpu_custom_call.1} parent=1 // pred_check
      _
    $region15: #{tpu_custom_call.1} parent=1 // pred_check_branch
      %34 = sbr.rel (0) target = $region17
    $region16: #{tpu_custom_call.1} parent=1 // pred_region
      %35 = dma.done [#allocation6], 128
    $region17: #{tpu_custom_call.1} parent=1 // pred_fallthru
      _
    %v36 = vld [vmem:[#allocation2] sm:$0xff]
    %v37 = vld [vmem:[#allocation2 + $0x8] sm:$0xff]
    %v38 = vld [vmem:[#allocation2 + $0x10] sm:$0xff]
    %v39 = vld [vmem:[#allocation2 + $0x18] sm:$0xff]
    %v40 = vld [vmem:[#allocation2 + $0x20] sm:$0xff]
    %v41 = vld [vmem:[#allocation2 + $0x28] sm:$0xff]
    %v42 = vld [vmem:[#allocation2 + $0x30] sm:$0xff]
    %v43 = vld [vmem:[#allocation2 + $0x38] sm:$0xff]
    %v44 = vld [vmem:[#allocation5] sm:$0xff]
    %v46 = vlaneseq
    %v47 = vshrl.u32 %v46, 7
    %v48 = vsub.s32 0, %v47
    %v49 = vrot.slane %v44, %v48
    %v50 = vlaneseq
    %v51 = vshrl.u32 %v50, 7
    %v52 = vsub.s32 1, %v51
    %v53 = vrot.slane %v44, %v52
    %v54 = vlaneseq
    %v55 = vshrl.u32 %v54, 7
    %v56 = vsub.s32 2, %v55
    %v57 = vrot.slane %v44, %v56
    %v58 = vlaneseq
    %v59 = vshrl.u32 %v58, 7
    %v60 = vsub.s32 3, %v59
    %v61 = vrot.slane %v44, %v60
    %v62 = vlaneseq
    %v63 = vshrl.u32 %v62, 7
    %v64 = vsub.s32 4, %v63
    %v65 = vrot.slane %v44, %v64
    %v66 = vlaneseq
    %v67 = vshrl.u32 %v66, 7
    %v68 = vsub.s32 5, %v67
    %v69 = vrot.slane %v44, %v68
    %v70 = vlaneseq
    %v71 = vshrl.u32 %v70, 7
    %v72 = vsub.s32 6, %v71
    %v73 = vrot.slane %v44, %v72
    %v74 = vlaneseq
    %v75 = vshrl.u32 %v74, 7
    %v76 = vsub.s32 7, %v75
    %v77 = vrot.slane %v44, %v76
    %v86 = vadd.f32 %v36, %v49
    %v87 = vadd.f32 %v37, %v53
    %v88 = vadd.f32 %v38, %v57
    %v89 = vadd.f32 %v39, %v61
    %v90 = vadd.f32 %v40, %v65
    %v91 = vadd.f32 %v41, %v69
    %v92 = vadd.f32 %v42, %v73
    %v93 = vadd.f32 %v43, %v77
    %94 = vst [vmem:[#allocation7] sm:$0xff] %v86
    %95 = vst [vmem:[#allocation7 + $0x8] sm:$0xff] %v87
    %96 = vst [vmem:[#allocation7 + $0x10] sm:$0xff] %v88
    %97 = vst [vmem:[#allocation7 + $0x18] sm:$0xff] %v89
    %98 = vst [vmem:[#allocation7 + $0x20] sm:$0xff] %v90
    %99 = vst [vmem:[#allocation7 + $0x28] sm:$0xff] %v91
    %100 = vst [vmem:[#allocation7 + $0x30] sm:$0xff] %v92
    %101 = vst [vmem:[#allocation7 + $0x38] sm:$0xff] %v93
    // Predicated region
    $region18: #{tpu_custom_call.1} parent=1 // pred_check
      _
    $region19: #{tpu_custom_call.1} parent=1 // pred_check_branch
      %103 = sbr.rel (0) target = $region21
    $region20: #{tpu_custom_call.1} parent=1 // pred_region
      %s105 = ssub.s32 1024, 1024
      %106 = vsyncadd [#allocation4], %s105
      %s108 = sshll.u32 [#allocation7], 4
      %s109 = int_to_ptr.vmem [resolvable:$true] %s108
      %111 = dma.vmem_to_hbm [thread:$0]  %s109, 1024, %s2, [#allocation4]
    $region21: #{tpu_custom_call.1} parent=1 // pred_fallthru
      _
    // Predicated region
    $region22: #{tpu_custom_call.1} parent=1 // pred_check
      _
    $region23: #{tpu_custom_call.1} parent=1 // pred_check_branch
      %113 = sbr.rel (0) target = $region25
    $region24: #{tpu_custom_call.1} parent=1 // pred_region
      %114 = dma.done [#allocation4], 1024
    $region25: #{tpu_custom_call.1} parent=1 // pred_fallthru
      _
    %115 = vsyncpa [#allocation3], 1
    %116 = vsyncpa [#allocation6], 1
    %117 = vsyncpa [#allocation4], 1

</llo_original>
